<compile_context>
chip_gen: v5e
topology: v5e:2x2
jax: 0.10.0
libtpu: 0.0.40
codegen_flags: <defaults>
</compile_context>

<pallas_src>
import functools

import jax
import jax.numpy as jnp
from jax.experimental import pallas as pl
from jax.experimental.pallas import tpu as pltpu

NEGATIVE_SLOPE = 0.1
_MAX_TILE = 2048  # lanes per grid step (keeps VMEM tiny even on v7x's 64 MiB)


def _conv1x1_leakyrelu_kernel(w_ref, b_ref, x_ref, o_ref, *, cin, cout):
    # w_ref: SMEM (cout, cin) f32 scalars
    # b_ref: SMEM (cout,)     f32 scalars
    # x_ref: VMEM (1, cin, TILE)   -- spatial axis in lanes
    # o_ref: VMEM (1, cout, TILE)  -- lane-dense output store
    x = x_ref[0]  # (cin, TILE)
    rows = []
    for co in range(cout):          # static, tiny (cout=2, cin=3): 6 VPU FMAs
        acc = x[0:1, :] * w_ref[co, 0]
        for ci in range(1, cin):
            acc = acc + x[ci:ci + 1, :] * w_ref[co, ci]
        acc = acc + b_ref[co]
        rows.append(jnp.where(acc > 0.0, acc, acc * NEGATIVE_SLOPE))
    o_ref[0] = jnp.concatenate(rows, axis=0)  # (cout, TILE) single dense store


def conv1x1_leakyrelu(x_nchw, weight, bias):
    """x_nchw: (N, Cin, H, W) f32; weight: (Cout, Cin, 1, 1); bias: (Cout,)."""
    n, cin, h, w = x_nchw.shape
    cout = weight.shape[0]
    hw = h * w

    # Free reshape: NCHW is contiguous, (N, Cin, H, W) -> (N, Cin, H*W).
    x3 = x_nchw.reshape(n, cin, hw)

    # Pad spatial axis to a multiple of the lane tile so blocks divide evenly.
    hw_pad = pl.cdiv(hw, 128) * 128
    tile = min(hw_pad, _MAX_TILE)
    hw_pad = pl.cdiv(hw_pad, tile) * tile
    if hw_pad != hw:
        x3 = jnp.pad(x3, ((0, 0), (0, 0), (0, hw_pad - hw)))
    ntiles = hw_pad // tile

    w2d = weight.reshape(cout, cin).astype(jnp.float32)  # SMEM scalars
    b1d = bias.astype(jnp.float32)                       # SMEM scalars

    kernel = functools.partial(_conv1x1_leakyrelu_kernel, cin=cin, cout=cout)

    out3 = pl.pallas_call(
        kernel,
        out_shape=jax.ShapeDtypeStruct((n, cout, hw_pad), jnp.float32),
        grid_spec=pltpu.PrefetchScalarGridSpec(
            num_scalar_prefetch=0,
            grid=(n, ntiles),
            in_specs=[
                pl.BlockSpec(memory_space=pltpu.MemorySpace.SMEM),      # weight
                pl.BlockSpec(memory_space=pltpu.MemorySpace.SMEM),      # bias
                pl.BlockSpec((1, cin, tile), lambda b, t: (b, 0, t)),   # x
            ],
            out_specs=pl.BlockSpec((1, cout, tile), lambda b, t: (b, 0, t)),
        ),
        compiler_params=pltpu.CompilerParams(
            dimension_semantics=("parallel", "parallel")),
    )(w2d, b1d, x3)

    # Drop spatial padding, free reshape back to NCHW.
    return out3[:, :, :hw].reshape(n, cout, h, w)


if __name__ == "__main__":
    key = jax.random.PRNGKey(0)
    kx, kw, kb = jax.random.split(key, 3)

    # Input consistent with Conv2d(3, 2, 1): NCHW, Cin=3
    x = jax.random.normal(kx, (2, 3, 16, 16), dtype=jnp.float32)

    # Deterministic parameters (shapes from Conv2d(3, 2, kernel_size=1))
    weight = jax.random.normal(kw, (2, 3, 1, 1), dtype=jnp.float32) * 0.5
    bias = jax.random.normal(kb, (2,), dtype=jnp.float32) * 0.1

    out = conv1x1_leakyrelu(x, weight, bias)
    jax.block_until_ready(out)

    # Reference check in plain JAX
    ref = jnp.einsum("nchw,oc->nohw", x, weight.reshape(2, 3)) + bias[None, :, None, None]
    ref = jnp.where(ref > 0, ref, ref * NEGATIVE_SLOPE)
    assert out.shape == (2, 2, 16, 16)
    assert jnp.allclose(out, ref, atol=1e-5, rtol=1e-5)

    print("KERNEL_OK")
</pallas_src>

<mosaic_0001>
module attributes {stable_mosaic.version = 11 : i64} {
  func.func @_conv1x1_leakyrelu_kernel(%arg0: i32, %arg1: i32, %arg2: memref<2x3xf32, #tpu.memory_space<smem>>, %arg3: memref<2xf32, #tpu.memory_space<smem>>, %arg4: memref<1x3x256xf32, #tpu.memory_space<vmem>>, %arg5: memref<1x2x256xf32, #tpu.memory_space<vmem>>) attributes {dimension_semantics = [#tpu.dimension_semantics<parallel>, #tpu.dimension_semantics<parallel>], iteration_bounds = array<i64: 2, 1>, scalar_prefetch = 0 : i64, scratch_operands = 0 : i64, tpu.core_type = #tpu.core_type<tc>, window_params = [{transform_indices = @transform_0, window_bounds = array<i64: 2, 3>}, {transform_indices = @transform_1, window_bounds = array<i64: 2>}, {transform_indices = @transform_2, window_bounds = array<i64: 1, 3, 256>}, {transform_indices = @transform_3, window_bounds = array<i64: 1, 2, 256>}]} {
    %c0 = arith.constant 0 : index
    %c0_0 = arith.constant 0 : index
    %c0_1 = arith.constant 0 : index
    %0 = vector.load %arg4[%c0, %c0_0, %c0_1] : memref<1x3x256xf32, #tpu.memory_space<vmem>>, vector<1x3x256xf32>
    %1 = vector.shape_cast %0 : vector<1x3x256xf32> to vector<3x256xf32>
    %2 = vector.extract_strided_slice %1 {offsets = [0, 0], sizes = [1, 256], strides = [1, 1]} : vector<3x256xf32> to vector<1x256xf32>
    %c0_2 = arith.constant 0 : index
    %c0_3 = arith.constant 0 : index
    %3 = memref.load %arg2[%c0_2, %c0_3] : memref<2x3xf32, #tpu.memory_space<smem>>
    %4 = vector.broadcast %3 : f32 to vector<1x256xf32>
    %5 = arith.mulf %2, %4 : vector<1x256xf32>
    %6 = vector.extract_strided_slice %1 {offsets = [1, 0], sizes = [1, 256], strides = [1, 1]} : vector<3x256xf32> to vector<1x256xf32>
    %c0_4 = arith.constant 0 : index
    %c1 = arith.constant 1 : index
    %7 = memref.load %arg2[%c0_4, %c1] : memref<2x3xf32, #tpu.memory_space<smem>>
    %8 = vector.broadcast %7 : f32 to vector<1x256xf32>
    %9 = arith.mulf %6, %8 : vector<1x256xf32>
    %10 = arith.addf %5, %9 : vector<1x256xf32>
    %11 = vector.extract_strided_slice %1 {offsets = [2, 0], sizes = [1, 256], strides = [1, 1]} : vector<3x256xf32> to vector<1x256xf32>
    %c0_5 = arith.constant 0 : index
    %c2 = arith.constant 2 : index
    %12 = memref.load %arg2[%c0_5, %c2] : memref<2x3xf32, #tpu.memory_space<smem>>
    %13 = vector.broadcast %12 : f32 to vector<1x256xf32>
    %14 = arith.mulf %11, %13 : vector<1x256xf32>
    %15 = arith.addf %10, %14 : vector<1x256xf32>
    %c0_6 = arith.constant 0 : index
    %16 = memref.load %arg3[%c0_6] : memref<2xf32, #tpu.memory_space<smem>>
    %17 = vector.broadcast %16 : f32 to vector<1x256xf32>
    %18 = arith.addf %15, %17 : vector<1x256xf32>
    %cst = arith.constant 0.000000e+00 : f32
    %19 = vector.broadcast %cst : f32 to vector<1x256xf32>
    %20 = arith.cmpf ogt, %18, %19 : vector<1x256xf32>
    %cst_7 = arith.constant 1.000000e-01 : f32
    %21 = vector.broadcast %cst_7 : f32 to vector<1x256xf32>
    %22 = arith.mulf %18, %21 : vector<1x256xf32>
    %23 = arith.select %20, %18, %22 : vector<1x256xi1>, vector<1x256xf32>
    %24 = vector.extract_strided_slice %1 {offsets = [0, 0], sizes = [1, 256], strides = [1, 1]} : vector<3x256xf32> to vector<1x256xf32>
    %c1_8 = arith.constant 1 : index
    %c0_9 = arith.constant 0 : index
    %25 = memref.load %arg2[%c1_8, %c0_9] : memref<2x3xf32, #tpu.memory_space<smem>>
    %26 = vector.broadcast %25 : f32 to vector<1x256xf32>
    %27 = arith.mulf %24, %26 : vector<1x256xf32>
    %28 = vector.extract_strided_slice %1 {offsets = [1, 0], sizes = [1, 256], strides = [1, 1]} : vector<3x256xf32> to vector<1x256xf32>
    %c1_10 = arith.constant 1 : index
    %c1_11 = arith.constant 1 : index
    %29 = memref.load %arg2[%c1_10, %c1_11] : memref<2x3xf32, #tpu.memory_space<smem>>
    %30 = vector.broadcast %29 : f32 to vector<1x256xf32>
    %31 = arith.mulf %28, %30 : vector<1x256xf32>
    %32 = arith.addf %27, %31 : vector<1x256xf32>
    %33 = vector.extract_strided_slice %1 {offsets = [2, 0], sizes = [1, 256], strides = [1, 1]} : vector<3x256xf32> to vector<1x256xf32>
    %c1_12 = arith.constant 1 : index
    %c2_13 = arith.constant 2 : index
    %34 = memref.load %arg2[%c1_12, %c2_13] : memref<2x3xf32, #tpu.memory_space<smem>>
    %35 = vector.broadcast %34 : f32 to vector<1x256xf32>
    %36 = arith.mulf %33, %35 : vector<1x256xf32>
    %37 = arith.addf %32, %36 : vector<1x256xf32>
    %c1_14 = arith.constant 1 : index
    %38 = memref.load %arg3[%c1_14] : memref<2xf32, #tpu.memory_space<smem>>
    %39 = vector.broadcast %38 : f32 to vector<1x256xf32>
    %40 = arith.addf %37, %39 : vector<1x256xf32>
    %cst_15 = arith.constant 0.000000e+00 : f32
    %41 = vector.broadcast %cst_15 : f32 to vector<1x256xf32>
    %42 = arith.cmpf ogt, %40, %41 : vector<1x256xf32>
    %cst_16 = arith.constant 1.000000e-01 : f32
    %43 = vector.broadcast %cst_16 : f32 to vector<1x256xf32>
    %44 = arith.mulf %40, %43 : vector<1x256xf32>
    %45 = arith.select %42, %40, %44 : vector<1x256xi1>, vector<1x256xf32>
    %46 = tpu.concatenate %23, %45 in 0 : vector<1x256xf32>, vector<1x256xf32> -> vector<2x256xf32>
    %c0_17 = arith.constant 0 : index
    %c0_18 = arith.constant 0 : index
    %c0_19 = arith.constant 0 : index
    %47 = vector.load %arg5[%c0_17, %c0_18, %c0_19] : memref<1x2x256xf32, #tpu.memory_space<vmem>>, vector<1x2x256xf32>
    %48 = vector.shape_cast %47 : vector<1x2x256xf32> to vector<2x256xf32>
    %49 = vector.shape_cast %46 : vector<2x256xf32> to vector<1x2x256xf32>
    tpu.vector_store %arg5[%c0_17, %c0_18, %c0_19], %49 {strides = array<i32>} : memref<1x2x256xf32, #tpu.memory_space<vmem>>, vector<1x2x256xf32>,
    return
  }
  func.func @transform_0(%arg0: i32, %arg1: i32) -> (i32, i32) {
    %c0_i32 = arith.constant 0 : i32
    %c0_i32_0 = arith.constant 0 : i32
    %c0_i32_1 = arith.constant 0 : i32
    return %c0_i32, %c0_i32_0 : i32, i32
  }
  func.func @transform_1(%arg0: i32, %arg1: i32) -> i32 {
    %c0_i32 = arith.constant 0 : i32
    %c0_i32_0 = arith.constant 0 : i32
    return %c0_i32 : i32
  }
  func.func @transform_2(%arg0: i32, %arg1: i32) -> (i32, i32, i32) {
    %c0_i32 = arith.constant 0 : i32
    %c0_i32_0 = arith.constant 0 : i32
    return %arg0, %c0_i32, %arg1 : i32, i32, i32
  }
  func.func @transform_3(%arg0: i32, %arg1: i32) -> (i32, i32, i32) {
    %c0_i32 = arith.constant 0 : i32
    %c0_i32_0 = arith.constant 0 : i32
    return %arg0, %c0_i32, %arg1 : i32, i32, i32
  }
}

</mosaic_0001>

<llo_original>
// kernel: tpu_custom_call.1
$region0: #{tpu_custom_call.1}
  #allocation0 [shape = 'u32[]', space=smem, size = 0x4, offset = 0x4, fixed_abs, tag = 'smem constant byte address 0x4 - core index']
  #allocation1 [shape = 'u32[72,128]{1,0:T(1,128)}', space=vmem, size = 0x9000, scoped, tag = 'internal scratch']
  %s0 = inlined_call_operand.vmem [shape: f32[2,3], index: 0, kind: input, shape index: {}]
  %s1 = inlined_call_operand.vmem [shape: f32[2], index: 1, kind: input, shape index: {}]
  %s2 = inlined_call_operand.vmem [shape: f32[2,3,256], index: 2, kind: input, shape index: {}]
  %s3 = inlined_call_operand.hbm [shape: f32[2,2,256], index: 3, kind: output, shape index: {}]
  %s4 = sld [smem:[#allocation0]]
  $region53: #{tpu_custom_call.1} parent=0
    _
  %s6 = ssub.s32 1, %s4
  %s7 = scalar_select 0, %s6, %s4
  $region1: #{tpu_custom_call.1} parent=0
    #allocation2 [shape = 'u8[1024]{0}', space=smem, size = 0x400, scoped, tag = 'input window, operand 0, single buffered']
    #allocation3 [shape = 's32[2]{0}', space=sflag, size = 0x8, scoped, tag = 'scoped memory for tpu_custom_call.1']
    #allocation4 [shape = 's32[2]{0}', space=sflag, size = 0x8, scoped, tag = 'scoped memory for tpu_custom_call.1']
    #allocation5 [shape = 'u8[512]{0}', space=smem, size = 0x200, scoped, tag = 'input window, operand 1, single buffered']
    #allocation6 [shape = 's32[1]{0}', space=sflag, size = 0x4, scoped, tag = 'scoped memory for tpu_custom_call.1']
    #allocation7 [shape = 'u8[4096]{0}', space=vmem, size = 0x1000, scoped, tag = 'output window, operand 0']
    %8 = vsyncpa [#allocation4], 0
    %9 = vsyncpa [#allocation6], 0
    %10 = vsyncpa [#allocation3], 0
    %s11 = scalar_lea.sflag [#allocation3], 1
    %12 = vsyncpa %s11, 0
    loop: start=0, step=1, limit=4
    $region2: #{tpu_custom_call.1} parent=1 // loop_pre_header
      _
    $region3: #{tpu_custom_call.1} parent=1 // loop_header
      %s14 = sphi 0, %s18
      %p15 = scmp.ge.s32.totalorder %s14, 4
      %s21 = sphi 0, %s33
      %s22 = sphi 0, %s29
      %s23 = sphi 0, %s21
      %s24 = sphi 0, %s22
      %s25 = sphi 0, %s23
      %s26 = sphi 0, %s24
      %s34 = sphi 0, %s34
      %s36 = sphi 0, %s34
      %s37 = sphi 0, %s36
      %s51 = sphi 0, %s37
      %s55 = sphi 0, %s55
      %s57 = sphi 0, %s55
      %s58 = sphi 0, %s57
      %s72 = sphi 0, %s58
      %s80 = sphi 0, %s82
      %s83 = sphi 0, %s80
      %s84 = sphi 0, %s83
      %s100 = sphi 0, %s84
      %s108 = sphi 0, %s110
      %s111 = sphi 0, %s108
      %s112 = sphi 0, %s111
      %s128 = sphi 0, %s112
    $region4: #{tpu_custom_call.1} parent=1 // loop_header_branch
      %17 = sbr.rel (%p15) target = $region8
    $region5: #{tpu_custom_call.1} parent=1 // loop_body
      %s19 = ssub.s32 %s14, 1
      %s20 = ssub.s32 %s14, 2
      %s27 = sadd.s32 1, %s22
      %p28 = scmp.ge.s32.totalorder %s27, 1
      %s29 = scalar_select %p28, 0, %s27
      %s30 = sadd.s32 1, %s21
      %s31 = scalar_select %p28, %s30, %s21
      %p32 = scmp.ge.s32.totalorder %s31, 2
      %s33 = scalar_select %p32, 0, %s31
      %s35 = sadd.s32 %s34, 1
      %p38 = scmp.eq.s32.totalorder %s14, 1
      %p39 = scmp.ne.s32.totalorder %s34, %s36
      %p40 = scmp.eq.s32.totalorder %s14, 0
      %p41 = por %p39, %p40
      %p42 = scmp.ne.s32.totalorder %s34, %s36
      %p43 = scmp.eq.s32.totalorder %s19, 1
      %p44 = por %p42, %p43
      %p45 = scmp.ne.s32.totalorder %s36, %s37
      %p46 = scmp.eq.s32.totalorder %s19, 0
      %p47 = por %p45, %p46
      %p48 = scmp.ne.s32.totalorder %s36, %s37
      %p49 = scmp.eq.s32.totalorder %s20, 1
      %p50 = por %p48, %p49
      %p52 = scmp.ne.s32.totalorder %s37, %s51
      %p53 = scmp.eq.s32.totalorder %s20, 0
      %p54 = por %p52, %p53
      %s56 = sadd.s32 %s55, 1
      %p59 = scmp.eq.s32.totalorder %s14, 1
      %p60 = scmp.ne.s32.totalorder %s55, %s57
      %p61 = scmp.eq.s32.totalorder %s14, 0
      %p62 = por %p60, %p61
      %p63 = scmp.ne.s32.totalorder %s55, %s57
      %p64 = scmp.eq.s32.totalorder %s19, 1
      %p65 = por %p63, %p64
      %p66 = scmp.ne.s32.totalorder %s57, %s58
      %p67 = scmp.eq.s32.totalorder %s19, 0
      %p68 = por %p66, %p67
      %p69 = scmp.ne.s32.totalorder %s57, %s58
      %p70 = scmp.eq.s32.totalorder %s20, 1
      %p71 = por %p69, %p70
      %p73 = scmp.ne.s32.totalorder %s58, %s72
      %p74 = scmp.eq.s32.totalorder %s20, 0
      %p75 = por %p73, %p74
      %s76 = ssub.s32 %s21, %s33
      %s77 = ssub.s32 %s22, %s29
      %s78 = sor.u32 %s76, %s77
      %p79 = scmp.eq.s32.totalorder %s78, 0
      %s81 = sadd.s32 %s80, 1
      %s82 = scalar_select %p79, %s80, %s81
      %p85 = pneg %p79
      %p86 = scmp.eq.s32.totalorder %s14, 1
      %p87 = por %p85, %p86
      %p88 = scmp.ne.s32.totalorder %s80, %s83
      %p89 = scmp.eq.s32.totalorder %s14, 0
      %p90 = por %p88, %p89
      %p91 = scmp.ne.s32.totalorder %s80, %s83
      %p92 = scmp.eq.s32.totalorder %s19, 1
      %p93 = por %p91, %p92
      %p94 = scmp.ne.s32.totalorder %s83, %s84
      %p95 = scmp.eq.s32.totalorder %s19, 0
      %p96 = por %p94, %p95
      %p97 = scmp.ne.s32.totalorder %s83, %s84
      %p98 = scmp.eq.s32.totalorder %s20, 1
      %p99 = por %p97, %p98
      %p101 = scmp.ne.s32.totalorder %s84, %s100
      %p102 = scmp.eq.s32.totalorder %s20, 0
      %p103 = por %p101, %p102
      %s104 = ssub.s32 %s21, %s33
      %s105 = ssub.s32 %s22, %s29
      %s106 = sor.u32 %s104, %s105
      %p107 = scmp.eq.s32.totalorder %s106, 0
      %s109 = sadd.s32 %s108, 1
      %s110 = scalar_select %p107, %s108, %s109
      %p113 = pneg %p107
      %p114 = scmp.eq.s32.totalorder %s14, 1
      %p115 = por %p113, %p114
      %p116 = scmp.ne.s32.totalorder %s108, %s111
      %p117 = scmp.eq.s32.totalorder %s14, 0
      %p118 = por %p116, %p117
      %p119 = scmp.ne.s32.totalorder %s108, %s111
      %p120 = scmp.eq.s32.totalorder %s19, 1
      %p121 = por %p119, %p120
      %p122 = scmp.ne.s32.totalorder %s111, %s112
      %p123 = scmp.eq.s32.totalorder %s19, 0
      %p124 = por %p122, %p123
      %p125 = scmp.ne.s32.totalorder %s111, %s112
      %p126 = scmp.eq.s32.totalorder %s20, 1
      %p127 = por %p125, %p126
      %p129 = scmp.ne.s32.totalorder %s112, %s128
      %p130 = scmp.eq.s32.totalorder %s20, 0
      %p131 = por %p129, %p130
      %p132 = scmp.le.s32.totalorder 1, %s14
      %p133 = scmp.lt.s32.totalorder %s14, 3
      %p134 = pnand %p132, %p133
      %p135 = pneg %p134
      // Predicated region
      $region9: #{tpu_custom_call.1} parent=5 // pred_check
        _
      $region10: #{tpu_custom_call.1} parent=5 // pred_check_branch
        %137 = sbr.rel (%p134) target = $region12
      $region11: #{tpu_custom_call.1} parent=5 // pred_region
        %s138 = ssub.s32 %s14, 1
        // Predicated region
        $region13: #{tpu_custom_call.1} parent=11 // pred_check
          %p139 = pneg %p47
        $region14: #{tpu_custom_call.1} parent=11 // pred_check_branch
          %141 = sbr.rel (%p139) target = $region16
        $region15: #{tpu_custom_call.1} parent=11 // pred_region
          %143 = vsyncadd [#allocation4], 0
          %s145 = sshll.u32 %s0, 4
          %s146 = int_to_ptr.vmem [resolvable:$true] %s145
          %148 = dma.vmem_to_smem %s146, 32, [#allocation2], [#allocation4]
        $region16: #{tpu_custom_call.1} parent=11 // pred_fallthru
          _
        // Predicated region
        $region17: #{tpu_custom_call.1} parent=11 // pred_check
          %p149 = pneg %p68
        $region18: #{tpu_custom_call.1} parent=11 // pred_check_branch
          %151 = sbr.rel (%p149) target = $region20
        $region19: #{tpu_custom_call.1} parent=11 // pred_region
          %153 = vsyncadd [#allocation6], 0
          %s155 = sshll.u32 %s1, 4
          %s156 = int_to_ptr.vmem [resolvable:$true] %s155
          %158 = dma.vmem_to_smem %s156, 16, [#allocation5], [#allocation6]
        $region20: #{tpu_custom_call.1} parent=11 // pred_fallthru
          _
      $region12: #{tpu_custom_call.1} parent=5 // pred_fallthru
        _
      %p159 = scmp.lt.s32.totalorder %s14, 2
      // Predicated region
      $region21: #{tpu_custom_call.1} parent=5 // pred_check
        %p160 = pneg %p159
      $region22: #{tpu_custom_call.1} parent=5 // pred_check_branch
        %162 = sbr.rel (%p160) target = $region24
      $region23: #{tpu_custom_call.1} parent=5 // pred_region
        // Predicated region
        $region25: #{tpu_custom_call.1} parent=23 // pred_check
          %p163 = pneg %p90
        $region26: #{tpu_custom_call.1} parent=23 // pred_check_branch
          %165 = sbr.rel (%p163) target = $region28
        $region27: #{tpu_custom_call.1} parent=23 // pred_region
          %s166 = smul.u32 2, %s22
          %p167 = scmp.lt.s32.totalorder %s21, 1
          %s168 = scalar_select %p167, %s21, 1
          %p169 = scmp.lt.s32.totalorder %s166, 1
          %s170 = scalar_select %p169, %s166, 1
          %s171 = smul.addr %s168, 2
          %s172 = sadd.s32 %s170, %s171
          %s173 = smul.addr %s172, 4
          %s174 = scalar_lea.vmem %s2, %s173
          %s175 = smul.u32 2, %s22
        $region28: #{tpu_custom_call.1} parent=23 // pred_fallthru
          _
      $region24: #{tpu_custom_call.1} parent=5 // pred_fallthru
        _
      %p176 = scmp.le.s32.totalorder 1, %s14
      %p177 = scmp.lt.s32.totalorder %s14, 3
      %p178 = pnand %p176, %p177
      %p179 = pneg %p178
      // Predicated region
      $region29: #{tpu_custom_call.1} parent=5 // pred_check
        _
      $region30: #{tpu_custom_call.1} parent=5 // pred_check_branch
        %181 = sbr.rel (%p178) target = $region32
      $region31: #{tpu_custom_call.1} parent=5 // pred_region
        %s182 = ssub.s32 %s14, 1
        // Predicated region
        $region33: #{tpu_custom_call.1} parent=31 // pred_check
          %p183 = pneg %p47
        $region34: #{tpu_custom_call.1} parent=31 // pred_check_branch
          %185 = sbr.rel (%p183) target = $region36
        $region35: #{tpu_custom_call.1} parent=31 // pred_region
          %187 = dma.done [#allocation4], 32
        $region36: #{tpu_custom_call.1} parent=31 // pred_fallthru
          _
        // Predicated region
        $region37: #{tpu_custom_call.1} parent=31 // pred_check
          %p188 = pneg %p68
        $region38: #{tpu_custom_call.1} parent=31 // pred_check_branch
          %190 = sbr.rel (%p188) target = $region40
        $region39: #{tpu_custom_call.1} parent=31 // pred_region
          %192 = dma.done [#allocation6], 16
        $region40: #{tpu_custom_call.1} parent=31 // pred_fallthru
          _
        %193 = sfence
        %p194 = pneg %p47
        %p195 = pneg %p44
        %p196 = pneg %p68
        %p197 = pneg %p65
        %s198 = smul.u32 2, %s24
        %p199 = scmp.lt.s32.totalorder %s23, 1
        %s200 = scalar_select %p199, %s23, 1
        %p201 = scmp.lt.s32.totalorder %s198, 1
        %s202 = scalar_select %p201, %s198, 1
        %s203 = smul.addr %s200, 2
        %s204 = sadd.s32 %s202, %s203
        %s205 = smul.addr %s204, 4
        %s206 = scalar_lea.vmem %s2, %s205
        %p207 = pneg %p96
        %p208 = pneg %p93
        %p209 = pneg %p124
        %p210 = pneg %p121
        %s211 = sand.u32 %s111, 1
        %s212 = scalar_lea.sflag [#allocation3], %s211
        %s213 = sand.u32 %s111, 1
        %s214 = smul.addr %s213, 4
        %s215 = scalar_lea.vmem [#allocation7], %s214
        %s216 = smul.u32 2, %s24
        %p217 = scmp.lt.s32.totalorder %s23, 1
        %s218 = scalar_select %p217, %s23, 1
        %p219 = scmp.lt.s32.totalorder %s216, 1
        %s220 = scalar_select %p219, %s216, 1
        %s221 = smul.addr %s218, 2
        %s222 = sadd.s32 %s220, %s221
        %s223 = smul.addr %s222, 4
        %s224 = scalar_lea.vmem %s2, %s223
        %s225 = smul.u32 2, %s24
        %s226 = smul.u32 2, %s24
        %v227 = vld [vmem:[%s224] sm:$0x77]
        %s228 = sld [smem:[#allocation2]]
        %v229 = vstv %s228
        %v230 = vmul.f32 %v227, %v229
        %s231 = sld [smem:[#allocation2 + $0x1]]
        %v232 = vstv %s231
        %v233 = vmul.f32 %v227, %v232
        %v235 = vrot.slane %v233, 5
        %v236 = vrot.slane %v235, 4
        %v238 = vadd.f32 %v230, %v236
        %s239 = sld [smem:[#allocation2 + $0x2]]
        %v240 = vstv %s239
        %v241 = vmul.f32 %v227, %v240
        %v243 = vrot.slane %v241, 6
        %v244 = vrot.slane %v243, 4
        %v246 = vadd.f32 %v238, %v244
        %s247 = sld [smem:[#allocation5]]
        %v248 = vstv %s247
        %v249 = vadd.f32 %v246, %v248
        %vm250 = vcmp.gt.f32.partialorder %v249, 0.0
        %v251 = vmul.f32 %v249, 0.1
        %v252 = vsel %vm250, %v249, %v251
        %s253 = sld [smem:[#allocation2 + $0x80]]
        %v254 = vstv %s253
        %v255 = vmul.f32 %v227, %v254
        %s256 = sld [smem:[#allocation2 + $0x81]]
        %v257 = vstv %s256
        %v258 = vmul.f32 %v227, %v257
        %v260 = vrot.slane %v258, 5
        %v261 = vrot.slane %v260, 4
        %v263 = vadd.f32 %v255, %v261
        %s264 = sld [smem:[#allocation2 + $0x82]]
        %v265 = vstv %s264
        %v266 = vmul.f32 %v227, %v265
        %v268 = vrot.slane %v266, 6
        %v269 = vrot.slane %v268, 4
        %v271 = vadd.f32 %v263, %v269
        %s272 = sld [smem:[#allocation5 + $0x1]]
        %v273 = vstv %s272
        %v274 = vadd.f32 %v271, %v273
        %vm275 = vcmp.gt.f32.partialorder %v274, 0.0
        %v276 = vmul.f32 %v274, 0.1
        %v277 = vsel %vm275, %v274, %v276
        %v279 = vperm.slane %v252, 0
        %v280 = vperm.slane %v252, 4
        %v284 = vperm.slane %v277, 0
        %v285 = vperm.slane %v277, 4
        %vm288 = vcmask 1040384
        %v289 = vsel %vm288, %v279, %v284
        %v290 = vsel %vm288, %v280, %v285
        %v293 = vrot.slane %v290, 6
        %vm294 = vcmask 1041408
        %v295 = vsel %vm294, %v289, %v293
        %297 = vst [vmem:[%s215] sm:$0xf] %v295
        %s298 = sand.u32 %s111, 1
        %s299 = scalar_lea.sflag [#allocation3], %s298
        %s300 = sand.u32 %s111, 1
        %s301 = smul.addr %s300, 4
        %s302 = scalar_lea.vmem [#allocation7], %s301
        // Predicated region
        $region41: #{tpu_custom_call.1} parent=31 // pred_check
          %p303 = pneg %p121
        $region42: #{tpu_custom_call.1} parent=31 // pred_check_branch
          %305 = sbr.rel (%p303) target = $region44
        $region43: #{tpu_custom_call.1} parent=31 // pred_region
          %s306 = smul.u32 2, %s24
          %308 = vsyncadd %s299, 0
          %s309 = smul.addr %s23, 2
          %s310 = sadd.s32 %s306, %s309
          %s311 = smul.addr %s310, 2
          %s312 = scalar_lea.hbm %s3, %s311
          %s314 = sshll.u32 %s302, 4
          %s315 = int_to_ptr.vmem [resolvable:$true] %s314
          %s316 = sshll.u32 %s312, 4
          %s317 = int_to_ptr.hbm [resolvable:$true] %s316
          %319 = dma.vmem_to_hbm [thread:$0]  %s315, 64, %s317, %s299
        $region44: #{tpu_custom_call.1} parent=31 // pred_fallthru
          _
      $region32: #{tpu_custom_call.1} parent=5 // pred_fallthru
        _
      %p320 = scmp.le.s32.totalorder 2, %s14
      // Predicated region
      $region45: #{tpu_custom_call.1} parent=5 // pred_check
        %p321 = pneg %p320
      $region46: #{tpu_custom_call.1} parent=5 // pred_check_branch
        %323 = sbr.rel (%p321) target = $region48
      $region47: #{tpu_custom_call.1} parent=5 // pred_region
        %s324 = ssub.s32 %s14, 2
        // Predicated region
        $region49: #{tpu_custom_call.1} parent=47 // pred_check
          %p325 = pneg %p127
        $region50: #{tpu_custom_call.1} parent=47 // pred_check_branch
          %327 = sbr.rel (%p325) target = $region52
        $region51: #{tpu_custom_call.1} parent=47 // pred_region
          %s328 = sand.u32 %s112, 1
          %s329 = scalar_lea.sflag [#allocation3], %s328
          %s330 = sand.u32 %s112, 1
          %s331 = smul.addr %s330, 4
          %s332 = scalar_lea.vmem [#allocation7], %s331
          %334 = dma.done %s329, 64
        $region52: #{tpu_custom_call.1} parent=47 // pred_fallthru
          _
      $region48: #{tpu_custom_call.1} parent=5 // pred_fallthru
        _
    $region6: #{tpu_custom_call.1} parent=1 // loop_footer
      %s18 = sadd.s32 1, %s14
    $region7: #{tpu_custom_call.1} parent=1 // loop_footer_branch
      %13 = sbr.rel target = $region3
    $region8: #{tpu_custom_call.1} parent=1 // loop_exit
      _
    %335 = vsyncpa [#allocation3], 1
    %s336 = scalar_lea.sflag [#allocation3], 1
    %337 = vsyncpa %s336, 1
    %338 = vsyncpa [#allocation4], 1
    %s339 = scalar_lea.sflag [#allocation4], 1
    %340 = vsyncpa %s339, 1
    %341 = vsyncpa [#allocation6], 1

</llo_original>
